<compile_context>
chip_gen: v6e
topology: v6e:2x2x1
jax: 0.10.0
libtpu: 0.0.40
codegen_flags: <defaults>
</compile_context>

<pallas_src>
import jax
import jax.numpy as jnp
from jax.experimental import pallas as pl
from jax.experimental.pallas import tpu as pltpu


def _round_up(n, m):
    return ((n + m - 1) // m) * m


def _sigmoid(x):
    # Numerically stable: no inf intermediates for very negative x.
    # exp() runs on the EUP slot; select/add on the VPU.
    e = jnp.exp(-jnp.abs(x))
    r = 1.0 / (1.0 + e)
    return jnp.where(x >= 0, r, e * r)


def apta_kernel(x_ref, w1_ref, w2_ref, w3_ref, w4_ref, w5_ref, b_ref, o_ref):
    f = x_ref.shape[1]        # input feature width
    p = w3_ref.shape[1]       # lane-padded tail width (128)
    cdt = w1_ref.dtype        # matmul compute dtype (bf16 or f32)

    x = x_ref[...]            # (TILE_B, F), already in compute dtype

    # lin1 -> relu
    h = jnp.dot(x, w1_ref[...], preferred_element_type=jnp.float32)
    h = jnp.maximum(h + b_ref[0:1, :f], 0.0)

    # lin2 -> sigmoid
    h = jnp.dot(h.astype(cdt), w2_ref[...], preferred_element_type=jnp.float32)
    h = _sigmoid(h + b_ref[1:2, :f])

    # lin3 (padded 42 -> p lanes) -> sigmoid
    h = jnp.dot(h.astype(cdt), w3_ref[...], preferred_element_type=jnp.float32)
    h = _sigmoid(h + b_ref[2:3, :p])

    # lin4 (padded 12 -> p lanes) -> relu
    h = jnp.dot(h.astype(cdt), w4_ref[...], preferred_element_type=jnp.float32)
    h = jnp.maximum(h + b_ref[3:4, :p], 0.0)

    # lin5 (12 -> 1) as a lane reduction instead of a 1-wide MXU dot.
    z = jnp.sum(h * w5_ref[...], axis=-1, keepdims=True) + b_ref[4:5, 0:1]
    o_ref[...] = _sigmoid(z).astype(o_ref.dtype)


def _prep_params(params, compute_dtype, lane_pad=128):
    """Cast / zero-pad parameters host-side for lane-dense kernel layouts."""
    w1, b1 = params["lin1"]
    w2, b2 = params["lin2"]
    w3, b3 = params["lin3"]
    w4, b4 = params["lin4"]
    w5, b5 = params["lin5"]

    F = w1.shape[0]
    P = lane_pad

    # Lane-dense padding of the 42/12/1 tail (padded weight rows/cols are 0).
    w3p = jnp.zeros((F, P), jnp.float32).at[:, : w3.shape[1]].set(w3)
    w4p = jnp.zeros((P, P), jnp.float32).at[: w4.shape[0], : w4.shape[1]].set(w4)
    w5row = jnp.zeros((1, P), jnp.float32).at[0, : w5.shape[0]].set(w5[:, 0])

    # Pack all five biases into one (8, W) f32 block -> single DMA.
    W = max(_round_up(F, 128), P)
    bpack = jnp.zeros((8, W), jnp.float32)
    bpack = bpack.at[0, :F].set(b1)
    bpack = bpack.at[1, :F].set(b2)
    bpack = bpack.at[2, : b3.shape[0]].set(b3)
    bpack = bpack.at[3, : b4.shape[0]].set(b4)
    bpack = bpack.at[4, 0].set(b5[0])

    return (
        w1.astype(compute_dtype),
        w2.astype(compute_dtype),
        w3p.astype(compute_dtype),
        w4p.astype(compute_dtype),
        w5row,    # kept f32 (used on the VPU reduction path)
        bpack,    # f32 biases
    )


def apta_forward(x, params, *, compute_dtype=jnp.bfloat16, tile_b=None):
    """x: [B, F] float32. params: dict of (w, b) pairs with w as [in, out]."""
    B, F = x.shape
    w1, w2, w3, w4, w5row, bpack = _prep_params(params, compute_dtype)
    P = w3.shape[1]
    W = bpack.shape[1]

    if tile_b is None:
        if B >= 512:
            tile_b = 256          # fills the 256-wide MXU on v6e/v7x
        elif B >= 128:
            tile_b = 128
        else:
            tile_b = _round_up(B, 8)
    B_pad = _round_up(B, tile_b)

    xc = x.astype(compute_dtype)
    if B_pad != B:
        xc = jnp.zeros((B_pad, F), compute_dtype).at[:B].set(xc)

    grid = (B_pad // tile_b,)

    # VMEM budget: resident weights/biases + double-buffered x/out tiles
    # + headroom, capped at v7x's 64 MiB physical VMEM.
    const_bytes = sum(int(a.size) * a.dtype.itemsize
                      for a in (w1, w2, w3, w4, w5row, bpack))
    tile_bytes = tile_b * F * jnp.dtype(compute_dtype).itemsize + tile_b * 4
    vmem_limit = int(min(64 * 1024 * 1024,
                         max(2 * (const_bytes + tile_bytes) + (2 << 20),
                             4 * 1024 * 1024)))

    out = pl.pallas_call(
        apta_kernel,
        out_shape=jax.ShapeDtypeStruct((B_pad, 1), jnp.float32),
        grid=grid,
        in_specs=[
            pl.BlockSpec((tile_b, F), lambda i: (i, 0)),   # x: tiled over batch
            pl.BlockSpec((F, F), lambda i: (0, 0)),        # w1 (grid-invariant)
            pl.BlockSpec((F, F), lambda i: (0, 0)),        # w2
            pl.BlockSpec((F, P), lambda i: (0, 0)),        # w3 (lane-padded)
            pl.BlockSpec((P, P), lambda i: (0, 0)),        # w4 (lane-padded)
            pl.BlockSpec((1, P), lambda i: (0, 0)),        # w5 as a row vector
            pl.BlockSpec((8, W), lambda i: (0, 0)),        # packed biases
        ],
        out_specs=pl.BlockSpec((tile_b, 1), lambda i: (i, 0)),
        compiler_params=pltpu.CompilerParams(
            dimension_semantics=("parallel",),
            vmem_limit_bytes=vmem_limit,
        ),
    )(xc, w1, w2, w3, w4, w5row, bpack)

    return out[:B]


def init_params(key, n_input_features):
    """Deterministic init; weights are [in, out] (transposed vs. PyTorch)."""
    dims = [
        ("lin1", n_input_features, n_input_features),
        ("lin2", n_input_features, n_input_features),
        ("lin3", n_input_features, 42),
        ("lin4", 42, 12),
        ("lin5", 12, 1),
    ]
    params = {}
    for name, fan_in, fan_out in dims:
        key, kw, kb = jax.random.split(key, 3)
        bound = 1.0 / jnp.sqrt(fan_in)  # mimic nn.Linear default init scale
        w = jax.random.uniform(kw, (fan_in, fan_out), jnp.float32, -bound, bound)
        b = jax.random.uniform(kb, (fan_out,), jnp.float32, -bound, bound)
        params[name] = (w, b)
    return params


def apta_reference(x, params):
    """Pure-JAX reference for correctness checking."""
    h = jnp.maximum(x @ params["lin1"][0] + params["lin1"][1], 0.0)
    h = jax.nn.sigmoid(h @ params["lin2"][0] + params["lin2"][1])
    h = jax.nn.sigmoid(h @ params["lin3"][0] + params["lin3"][1])
    h = jnp.maximum(h @ params["lin4"][0] + params["lin4"][1], 0.0)
    h = jax.nn.sigmoid(h @ params["lin5"][0] + params["lin5"][1])
    return h


if __name__ == "__main__":
    key = jax.random.PRNGKey(0)
    key, kx = jax.random.split(key)

    batch = 8
    n_input_features = 32

    x = jax.random.normal(kx, (batch, n_input_features), jnp.float32)
    params = init_params(key, n_input_features)

    ref = apta_reference(x, params)

    # Exact f32 path: matches the reference to tight tolerance.
    out_f32 = jax.block_until_ready(
        apta_forward(x, params, compute_dtype=jnp.float32))
    assert out_f32.shape == (batch, 1)
    assert jnp.allclose(out_f32, ref, atol=1e-5, rtol=1e-5), "f32 mismatch vs reference"

    # bf16-weight path (MXU-native, f32 accumulation): looser tolerance.
    out_bf16 = jax.block_until_ready(
        apta_forward(x, params, compute_dtype=jnp.bfloat16))
    assert out_bf16.shape == (batch, 1)
    assert jnp.allclose(out_bf16, ref, atol=2e-2, rtol=0.0), "bf16 mismatch vs reference"

    print("KERNEL_OK")
</pallas_src>

<mosaic_0001>
module attributes {stable_mosaic.version = 11 : i64} {
  func.func @apta_kernel(%arg0: i32, %arg1: memref<8x32xf32, #tpu.memory_space<vmem>>, %arg2: memref<32x32xf32, #tpu.memory_space<vmem>>, %arg3: memref<32x32xf32, #tpu.memory_space<vmem>>, %arg4: memref<32x128xf32, #tpu.memory_space<vmem>>, %arg5: memref<128x128xf32, #tpu.memory_space<vmem>>, %arg6: memref<1x128xf32, #tpu.memory_space<vmem>>, %arg7: memref<8x128xf32, #tpu.memory_space<vmem>>, %arg8: memref<8x1xf32, #tpu.memory_space<vmem>>) attributes {dimension_semantics = [#tpu.dimension_semantics<parallel>], iteration_bounds = array<i64: 1>, scalar_prefetch = 0 : i64, scratch_operands = 0 : i64, tpu.core_type = #tpu.core_type<tc>, window_params = [{transform_indices = @transform_0, window_bounds = array<i64: 8, 32>}, {pipeline_mode = #tpu.pipeline_mode<synchronous>, transform_indices = @transform_1, window_bounds = array<i64: 32, 32>}, {pipeline_mode = #tpu.pipeline_mode<synchronous>, transform_indices = @transform_2, window_bounds = array<i64: 32, 32>}, {pipeline_mode = #tpu.pipeline_mode<synchronous>, transform_indices = @transform_3, window_bounds = array<i64: 32, 128>}, {pipeline_mode = #tpu.pipeline_mode<synchronous>, transform_indices = @transform_4, window_bounds = array<i64: 128, 128>}, {pipeline_mode = #tpu.pipeline_mode<synchronous>, transform_indices = @transform_5, window_bounds = array<i64: 1, 128>}, {pipeline_mode = #tpu.pipeline_mode<synchronous>, transform_indices = @transform_6, window_bounds = array<i64: 8, 128>}, {transform_indices = @transform_7, window_bounds = array<i64: 8, 1>}]} {
    %c0 = arith.constant 0 : index
    %c0_0 = arith.constant 0 : index
    %0 = vector.load %arg1[%c0, %c0_0] : memref<8x32xf32, #tpu.memory_space<vmem>>, vector<8x32xf32>
    %c0_1 = arith.constant 0 : index
    %c0_2 = arith.constant 0 : index
    %1 = vector.load %arg2[%c0_1, %c0_2] : memref<32x32xf32, #tpu.memory_space<vmem>>, vector<32x32xf32>
    %cst = arith.constant dense<0.000000e+00> : vector<8x32xf32>
    %2 = tpu.matmul %0, %1, %cst {dimension_numbers = #tpu.dot_dimension_numbers<[1], [0], [0], [1], [0, 0, 1, 1], [], []>} : vector<8x32xf32>, vector<32x32xf32>, vector<8x32xf32> -> vector<8x32xf32>
    %c0_3 = arith.constant 0 : index
    %c0_4 = arith.constant 0 : index
    %3 = vector.load %arg7[%c0_3, %c0_4] : memref<8x128xf32, #tpu.memory_space<vmem>>, vector<1x32xf32>
    %4 = vector.broadcast %3 : vector<1x32xf32> to vector<8x32xf32>
    %5 = arith.addf %2, %4 : vector<8x32xf32>
    %cst_5 = arith.constant 0.000000e+00 : f32
    %6 = vector.broadcast %cst_5 : f32 to vector<8x32xf32>
    %7 = arith.maximumf %5, %6 : vector<8x32xf32>
    %c0_6 = arith.constant 0 : index
    %c0_7 = arith.constant 0 : index
    %8 = vector.load %arg3[%c0_6, %c0_7] : memref<32x32xf32, #tpu.memory_space<vmem>>, vector<32x32xf32>
    %cst_8 = arith.constant dense<0.000000e+00> : vector<8x32xf32>
    %9 = tpu.matmul %7, %8, %cst_8 {dimension_numbers = #tpu.dot_dimension_numbers<[1], [0], [0], [1], [0, 0, 1, 1], [], []>} : vector<8x32xf32>, vector<32x32xf32>, vector<8x32xf32> -> vector<8x32xf32>
    %c1 = arith.constant 1 : index
    %c0_9 = arith.constant 0 : index
    %10 = vector.load %arg7[%c1, %c0_9] : memref<8x128xf32, #tpu.memory_space<vmem>>, vector<1x32xf32>
    %11 = vector.broadcast %10 : vector<1x32xf32> to vector<8x32xf32>
    %12 = arith.addf %9, %11 : vector<8x32xf32>
    %13 = math.absf %12 : vector<8x32xf32>
    %cst_10 = arith.constant 0.000000e+00 : f32
    %14 = vector.broadcast %cst_10 : f32 to vector<8x32xf32>
    %15 = arith.subf %14, %13 : vector<8x32xf32>
    %16 = math.exp %15 : vector<8x32xf32>
    %cst_11 = arith.constant 1.000000e+00 : f32
    %17 = vector.broadcast %cst_11 : f32 to vector<8x32xf32>
    %18 = arith.addf %17, %16 : vector<8x32xf32>
    %cst_12 = arith.constant 1.000000e+00 : f32
    %19 = vector.broadcast %cst_12 : f32 to vector<8x32xf32>
    %20 = arith.divf %19, %18 : vector<8x32xf32>
    %cst_13 = arith.constant 0.000000e+00 : f32
    %21 = vector.broadcast %cst_13 : f32 to vector<8x32xf32>
    %22 = arith.cmpf oge, %12, %21 : vector<8x32xf32>
    %23 = arith.mulf %16, %20 : vector<8x32xf32>
    %24 = arith.select %22, %20, %23 : vector<8x32xi1>, vector<8x32xf32>
    %c0_14 = arith.constant 0 : index
    %c0_15 = arith.constant 0 : index
    %25 = vector.load %arg4[%c0_14, %c0_15] : memref<32x128xf32, #tpu.memory_space<vmem>>, vector<32x128xf32>
    %cst_16 = arith.constant dense<0.000000e+00> : vector<8x128xf32>
    %26 = tpu.matmul %24, %25, %cst_16 {dimension_numbers = #tpu.dot_dimension_numbers<[1], [0], [0], [1], [0, 0, 1, 1], [], []>} : vector<8x32xf32>, vector<32x128xf32>, vector<8x128xf32> -> vector<8x128xf32>
    %c2 = arith.constant 2 : index
    %c0_17 = arith.constant 0 : index
    %27 = vector.load %arg7[%c2, %c0_17] : memref<8x128xf32, #tpu.memory_space<vmem>>, vector<1x128xf32>
    %28 = vector.broadcast %27 : vector<1x128xf32> to vector<8x128xf32>
    %29 = arith.addf %26, %28 : vector<8x128xf32>
    %30 = math.absf %29 : vector<8x128xf32>
    %cst_18 = arith.constant 0.000000e+00 : f32
    %31 = vector.broadcast %cst_18 : f32 to vector<8x128xf32>
    %32 = arith.subf %31, %30 : vector<8x128xf32>
    %33 = math.exp %32 : vector<8x128xf32>
    %cst_19 = arith.constant 1.000000e+00 : f32
    %34 = vector.broadcast %cst_19 : f32 to vector<8x128xf32>
    %35 = arith.addf %34, %33 : vector<8x128xf32>
    %cst_20 = arith.constant 1.000000e+00 : f32
    %36 = vector.broadcast %cst_20 : f32 to vector<8x128xf32>
    %37 = arith.divf %36, %35 : vector<8x128xf32>
    %cst_21 = arith.constant 0.000000e+00 : f32
    %38 = vector.broadcast %cst_21 : f32 to vector<8x128xf32>
    %39 = arith.cmpf oge, %29, %38 : vector<8x128xf32>
    %40 = arith.mulf %33, %37 : vector<8x128xf32>
    %41 = arith.select %39, %37, %40 : vector<8x128xi1>, vector<8x128xf32>
    %c0_22 = arith.constant 0 : index
    %c0_23 = arith.constant 0 : index
    %42 = vector.load %arg5[%c0_22, %c0_23] : memref<128x128xf32, #tpu.memory_space<vmem>>, vector<128x128xf32>
    %cst_24 = arith.constant dense<0.000000e+00> : vector<8x128xf32>
    %43 = tpu.matmul %41, %42, %cst_24 {dimension_numbers = #tpu.dot_dimension_numbers<[1], [0], [0], [1], [0, 0, 1, 1], [], []>} : vector<8x128xf32>, vector<128x128xf32>, vector<8x128xf32> -> vector<8x128xf32>
    %c3 = arith.constant 3 : index
    %c0_25 = arith.constant 0 : index
    %44 = vector.load %arg7[%c3, %c0_25] : memref<8x128xf32, #tpu.memory_space<vmem>>, vector<1x128xf32>
    %45 = vector.broadcast %44 : vector<1x128xf32> to vector<8x128xf32>
    %46 = arith.addf %43, %45 : vector<8x128xf32>
    %cst_26 = arith.constant 0.000000e+00 : f32
    %47 = vector.broadcast %cst_26 : f32 to vector<8x128xf32>
    %48 = arith.maximumf %46, %47 : vector<8x128xf32>
    %c0_27 = arith.constant 0 : index
    %c0_28 = arith.constant 0 : index
    %49 = vector.load %arg6[%c0_27, %c0_28] : memref<1x128xf32, #tpu.memory_space<vmem>>, vector<1x128xf32>
    %50 = vector.broadcast %49 : vector<1x128xf32> to vector<8x128xf32>
    %51 = arith.mulf %48, %50 : vector<8x128xf32>
    %cst_29 = arith.constant dense<0.000000e+00> : vector<8xf32>
    %52 = vector.multi_reduction <add>, %51, %cst_29 [1] : vector<8x128xf32> to vector<8xf32>
    %53 = vector.shape_cast %52 : vector<8xf32> to vector<8x1xf32>
    %c4 = arith.constant 4 : index
    %c0_30 = arith.constant 0 : index
    %54 = vector.load %arg7[%c4, %c0_30] : memref<8x128xf32, #tpu.memory_space<vmem>>, vector<1x1xf32>
    %55 = vector.broadcast %54 : vector<1x1xf32> to vector<8x1xf32>
    %56 = arith.addf %53, %55 : vector<8x1xf32>
    %57 = math.absf %56 : vector<8x1xf32>
    %cst_31 = arith.constant 0.000000e+00 : f32
    %58 = vector.broadcast %cst_31 : f32 to vector<8x1xf32>
    %59 = arith.subf %58, %57 : vector<8x1xf32>
    %60 = math.exp %59 : vector<8x1xf32>
    %cst_32 = arith.constant 1.000000e+00 : f32
    %61 = vector.broadcast %cst_32 : f32 to vector<8x1xf32>
    %62 = arith.addf %61, %60 : vector<8x1xf32>
    %cst_33 = arith.constant 1.000000e+00 : f32
    %63 = vector.broadcast %cst_33 : f32 to vector<8x1xf32>
    %64 = arith.divf %63, %62 : vector<8x1xf32>
    %cst_34 = arith.constant 0.000000e+00 : f32
    %65 = vector.broadcast %cst_34 : f32 to vector<8x1xf32>
    %66 = arith.cmpf oge, %56, %65 : vector<8x1xf32>
    %67 = arith.mulf %60, %64 : vector<8x1xf32>
    %68 = arith.select %66, %64, %67 : vector<8x1xi1>, vector<8x1xf32>
    %c0_35 = arith.constant 0 : index
    %c0_36 = arith.constant 0 : index
    %69 = vector.load %arg8[%c0_35, %c0_36] : memref<8x1xf32, #tpu.memory_space<vmem>>, vector<8x1xf32>
    tpu.vector_store %arg8[%c0_35, %c0_36], %68 {strides = array<i32>} : memref<8x1xf32, #tpu.memory_space<vmem>>, vector<8x1xf32>,
    return
  }
  func.func @transform_0(%arg0: i32) -> (i32, i32) {
    %c0_i32 = arith.constant 0 : i32
    %c0_i32_0 = arith.constant 0 : i32
    return %arg0, %c0_i32 : i32, i32
  }
  func.func @transform_1(%arg0: i32) -> (i32, i32) {
    %c0_i32 = arith.constant 0 : i32
    %c0_i32_0 = arith.constant 0 : i32
    %c0_i32_1 = arith.constant 0 : i32
    return %c0_i32, %c0_i32_0 : i32, i32
  }
  func.func @transform_2(%arg0: i32) -> (i32, i32) {
    %c0_i32 = arith.constant 0 : i32
    %c0_i32_0 = arith.constant 0 : i32
    %c0_i32_1 = arith.constant 0 : i32
    return %c0_i32, %c0_i32_0 : i32, i32
  }
  func.func @transform_3(%arg0: i32) -> (i32, i32) {
    %c0_i32 = arith.constant 0 : i32
    %c0_i32_0 = arith.constant 0 : i32
    %c0_i32_1 = arith.constant 0 : i32
    return %c0_i32, %c0_i32_0 : i32, i32
  }
  func.func @transform_4(%arg0: i32) -> (i32, i32) {
    %c0_i32 = arith.constant 0 : i32
    %c0_i32_0 = arith.constant 0 : i32
    %c0_i32_1 = arith.constant 0 : i32
    return %c0_i32, %c0_i32_0 : i32, i32
  }
  func.func @transform_5(%arg0: i32) -> (i32, i32) {
    %c0_i32 = arith.constant 0 : i32
    %c0_i32_0 = arith.constant 0 : i32
    %c0_i32_1 = arith.constant 0 : i32
    return %c0_i32, %c0_i32_0 : i32, i32
  }
  func.func @transform_6(%arg0: i32) -> (i32, i32) {
    %c0_i32 = arith.constant 0 : i32
    %c0_i32_0 = arith.constant 0 : i32
    %c0_i32_1 = arith.constant 0 : i32
    return %c0_i32, %c0_i32_0 : i32, i32
  }
  func.func @transform_7(%arg0: i32) -> (i32, i32) {
    %c0_i32 = arith.constant 0 : i32
    %c0_i32_0 = arith.constant 0 : i32
    return %arg0, %c0_i32 : i32, i32
  }
}

</mosaic_0001>

<llo_original>
// kernel: tpu_custom_call.1
$region0: #{tpu_custom_call.1}
  #allocation0 [shape = 'u32[]', space=smem, size = 0x4, offset = 0x4, fixed_abs, tag = 'smem constant byte address 0x4 - core index']
  #allocation1 [shape = 'u32[144,128]{1,0:T(1,128)}', space=vmem, size = 0x12000, scoped, tag = 'internal scratch']
  %s0 = inlined_call_operand.hbm [shape: f32[8,32], index: 0, kind: input, shape index: {}]
  %s1 = inlined_call_operand.hbm [shape: f32[32,32], index: 1, kind: input, shape index: {}]
  %s2 = inlined_call_operand.hbm [shape: f32[32,32], index: 2, kind: input, shape index: {}]
  %s3 = inlined_call_operand.hbm [shape: f32[32,128], index: 3, kind: input, shape index: {}]
  %s4 = inlined_call_operand.hbm [shape: f32[128,128], index: 4, kind: input, shape index: {}]
  %s5 = inlined_call_operand.vmem [shape: f32[1,128], index: 5, kind: input, shape index: {}]
  %s6 = inlined_call_operand.vmem [shape: f32[8,128], index: 6, kind: input, shape index: {}]
  %s7 = inlined_call_operand.vmem [shape: f32[8,1], index: 7, kind: output, shape index: {}]
  %s8 = sld [smem:[#allocation0]]
  $region58: #{tpu_custom_call.1} parent=0
    _
  %s10 = ssub.s32 1, %s8
  %s11 = scalar_select 0, %s10, %s8
  $region1: #{tpu_custom_call.1} parent=0
    #allocation2 [shape = 'u8[4096]{0}', space=vmem, size = 0x1000, scoped, tag = 'input window, operand 0, single buffered']
    #allocation3 [shape = 's32[1]{0}', space=sflag, size = 0x4, scoped, tag = 'scoped memory for tpu_custom_call.1']
    #allocation4 [shape = 'u8[16384]{0}', space=vmem, size = 0x4000, scoped, tag = 'input window, operand 1, single buffered']
    #allocation5 [shape = 's32[1]{0}', space=sflag, size = 0x4, scoped, tag = 'scoped memory for tpu_custom_call.1']
    #allocation6 [shape = 'u8[16384]{0}', space=vmem, size = 0x4000, scoped, tag = 'input window, operand 2, single buffered']
    #allocation7 [shape = 'u8[16384]{0}', space=vmem, size = 0x4000, scoped, tag = 'input window, operand 3, single buffered']
    #allocation8 [shape = 's32[1]{0}', space=sflag, size = 0x4, scoped, tag = 'scoped memory for tpu_custom_call.1']
    #allocation9 [shape = 'u8[65536]{0}', space=vmem, size = 0x10000, scoped, tag = 'input window, operand 4, single buffered']
    %12 = vsyncpa [#allocation3], 0
    %13 = vsyncpa [#allocation5], 0
    %14 = vsyncpa [#allocation8], 0
    // Predicated region
    $region2: #{tpu_custom_call.1} parent=1 // pred_check
      _
    $region3: #{tpu_custom_call.1} parent=1 // pred_check_branch
      %16 = sbr.rel (0) target = $region5
    $region4: #{tpu_custom_call.1} parent=1 // pred_region
      %s18 = ssub.s32 128, 128
      %19 = vsyncadd [#allocation3], %s18
      %s21 = sshll.u32 [#allocation2], 4
      %s22 = int_to_ptr.vmem [resolvable:$true] %s21
      %24 = dma.hbm_to_vmem [thread:$0]  %s0, 128, %s22, [#allocation3]
    $region5: #{tpu_custom_call.1} parent=1 // pred_fallthru
      _
    // Predicated region
    $region6: #{tpu_custom_call.1} parent=1 // pred_check
      _
    $region7: #{tpu_custom_call.1} parent=1 // pred_check_branch
      %26 = sbr.rel (0) target = $region9
    $region8: #{tpu_custom_call.1} parent=1 // pred_region
      %s28 = ssub.s32 512, 512
      %29 = vsyncadd [#allocation5], %s28
      %s30 = sshll.u32 [#allocation4], 4
      %s31 = int_to_ptr.vmem [resolvable:$true] %s30
      %36 = dma.hbm_to_vmem [thread:$0]  %s1, 512, %s31, [#allocation5], 128, 128, 8
    $region9: #{tpu_custom_call.1} parent=1 // pred_fallthru
      _
    // Predicated region
    $region10: #{tpu_custom_call.1} parent=1 // pred_check
      _
    $region11: #{tpu_custom_call.1} parent=1 // pred_check_branch
      %38 = sbr.rel (0) target = $region13
    $region12: #{tpu_custom_call.1} parent=1 // pred_region
      %s40 = ssub.s32 512, 512
      %41 = vsyncadd [#allocation5], %s40
      %s42 = sshll.u32 [#allocation6], 4
      %s43 = int_to_ptr.vmem [resolvable:$true] %s42
      %48 = dma.hbm_to_vmem [thread:$0]  %s2, 512, %s43, [#allocation5], 128, 128, 8
    $region13: #{tpu_custom_call.1} parent=1 // pred_fallthru
      _
    // Predicated region
    $region14: #{tpu_custom_call.1} parent=1 // pred_check
      _
    $region15: #{tpu_custom_call.1} parent=1 // pred_check_branch
      %50 = sbr.rel (0) target = $region17
    $region16: #{tpu_custom_call.1} parent=1 // pred_region
      %s52 = ssub.s32 512, 512
      %53 = vsyncadd [#allocation8], %s52
      %s54 = sshll.u32 [#allocation7], 4
      %s55 = int_to_ptr.vmem [resolvable:$true] %s54
      %60 = dma.hbm_to_vmem [thread:$0]  %s3, 512, %s55, [#allocation8], 128, 128, 8
    $region17: #{tpu_custom_call.1} parent=1 // pred_fallthru
      _
    // Predicated region
    $region18: #{tpu_custom_call.1} parent=1 // pred_check
      _
    $region19: #{tpu_custom_call.1} parent=1 // pred_check_branch
      %62 = sbr.rel (0) target = $region21
    $region20: #{tpu_custom_call.1} parent=1 // pred_region
      %s64 = ssub.s32 2048, 2048
      %65 = vsyncadd [#allocation8], %s64
      %s66 = sshll.u32 [#allocation9], 4
      %s67 = int_to_ptr.vmem [resolvable:$true] %s66
      %72 = dma.hbm_to_vmem [thread:$0]  %s4, 2048, %s67, [#allocation8], 128, 128, 8
    $region21: #{tpu_custom_call.1} parent=1 // pred_fallthru
      _
    // Predicated region
    $region22: #{tpu_custom_call.1} parent=1 // pred_check
      _
    $region23: #{tpu_custom_call.1} parent=1 // pred_check_branch
      %74 = sbr.rel (0) target = $region25
    $region24: #{tpu_custom_call.1} parent=1 // pred_region
      _
    $region25: #{tpu_custom_call.1} parent=1 // pred_fallthru
      _
    // Predicated region
    $region26: #{tpu_custom_call.1} parent=1 // pred_check
      _
    $region27: #{tpu_custom_call.1} parent=1 // pred_check_branch
      %76 = sbr.rel (0) target = $region29
    $region28: #{tpu_custom_call.1} parent=1 // pred_region
      _
    $region29: #{tpu_custom_call.1} parent=1 // pred_fallthru
      _
    // Predicated region
    $region30: #{tpu_custom_call.1} parent=1 // pred_check
      _
    $region31: #{tpu_custom_call.1} parent=1 // pred_check_branch
      %78 = sbr.rel (0) target = $region33
    $region32: #{tpu_custom_call.1} parent=1 // pred_region
      %79 = dma.done [#allocation3], 128
    $region33: #{tpu_custom_call.1} parent=1 // pred_fallthru
      _
    // Predicated region
    $region34: #{tpu_custom_call.1} parent=1 // pred_check
      _
    $region35: #{tpu_custom_call.1} parent=1 // pred_check_branch
      %81 = sbr.rel (0) target = $region37
    $region36: #{tpu_custom_call.1} parent=1 // pred_region
      %82 = dma.done [#allocation5], 512
    $region37: #{tpu_custom_call.1} parent=1 // pred_fallthru
      _
    // Predicated region
    $region38: #{tpu_custom_call.1} parent=1 // pred_check
      _
    $region39: #{tpu_custom_call.1} parent=1 // pred_check_branch
      %84 = sbr.rel (0) target = $region41
    $region40: #{tpu_custom_call.1} parent=1 // pred_region
      %85 = dma.done [#allocation5], 512
    $region41: #{tpu_custom_call.1} parent=1 // pred_fallthru
      _
    // Predicated region
    $region42: #{tpu_custom_call.1} parent=1 // pred_check
      _
    $region43: #{tpu_custom_call.1} parent=1 // pred_check_branch
      %87 = sbr.rel (0) target = $region45
    $region44: #{tpu_custom_call.1} parent=1 // pred_region
      %88 = dma.done [#allocation8], 512
    $region45: #{tpu_custom_call.1} parent=1 // pred_fallthru
      _
    // Predicated region
    $region46: #{tpu_custom_call.1} parent=1 // pred_check
      _
    $region47: #{tpu_custom_call.1} parent=1 // pred_check_branch
      %90 = sbr.rel (0) target = $region49
    $region48: #{tpu_custom_call.1} parent=1 // pred_region
      %91 = dma.done [#allocation8], 2048
    $region49: #{tpu_custom_call.1} parent=1 // pred_fallthru
      _
    %v92 = vld [vmem:[#allocation2] sm:$0xff]
    %v93 = vld [vmem:[#allocation4] sm:$0xff]
    %v94 = vld [vmem:[#allocation4 + $0x8] sm:$0xff]
    %v95 = vld [vmem:[#allocation4 + $0x10] sm:$0xff]
    %v96 = vld [vmem:[#allocation4 + $0x18] sm:$0xff]
    %v97 = vld [vmem:[%s6] sm:$0x1]
    %v98 = vlaneseq
    %v99 = vshrl.u32 %v98, 7
    %v100 = vsub.s32 0, %v99
    %v101 = vrot.slane %v97, %v100
    %vm102 = vcmask 261120
    %v104 = vsel %vm102, %v92, 0
    %106 = vmatprep.subr.mxu0 0.0
    %107 = vmatpush1.msra.mxu0 0.0
    %108 = vmatprep.subr.mxu0 0.0
    %109 = vmatpush1.msra.mxu0 0.0
    %110 = vmatprep.subr.mxu0 0.0
    %111 = vmatpush1.msra.mxu0 0.0
    %112 = vmatprep.subr.mxu0 0.0
    %113 = vmatpush1.msra.mxu0 0.0
    %114 = vmatprep.subr.mxu0 0.0
    %115 = vmatpush1.msra.mxu0 0.0
    %116 = vmatprep.subr.mxu0 0.0
    %117 = vmatpush1.msra.mxu0 0.0
    %118 = vmatprep.subr.mxu0 0.0
    %119 = vmatpush1.msra.mxu0 0.0
    %120 = vmatprep.subr.mxu0 0.0
    %121 = vmatpush1.msra.mxu0 0.0
    %122 = vmatprep.subr.mxu0 0.0
    %123 = vmatpush1.msra.mxu0 0.0
    %124 = vmatprep.subr.mxu0 0.0
    %125 = vmatpush1.msra.mxu0 0.0
    %126 = vmatprep.subr.mxu0 0.0
    %127 = vmatpush1.msra.mxu0 0.0
    %128 = vmatprep.subr.mxu0 0.0
    %129 = vmatpush1.msra.mxu0 0.0
    %130 = vmatprep.subr.mxu0 0.0
    %131 = vmatpush1.msra.mxu0 %v96
    %132 = vmatprep.subr.mxu0 0.0
    %133 = vmatpush1.msra.mxu0 %v95
    %134 = vmatprep.subr.mxu0 0.0
    %135 = vmatpush1.msra.mxu0 %v94
    %136 = vmatprep.subr.mxu0 0.0
    %137 = vmatpush1.msra.mxu0 %v93
    %138 = vmatprep.subr.mxu0 0.0
    %139 = vmatpush2.msra.mxu0 0.0
    %140 = vmatprep.subr.mxu0 0.0
    %141 = vmatpush2.msra.mxu0 0.0
    %142 = vmatprep.subr.mxu0 0.0
    %143 = vmatpush2.msra.mxu0 0.0
    %144 = vmatprep.subr.mxu0 0.0
    %145 = vmatpush2.msra.mxu0 0.0
    %146 = vmatprep.subr.mxu0 0.0
    %147 = vmatpush2.msra.mxu0 0.0
    %148 = vmatprep.subr.mxu0 0.0
    %149 = vmatpush2.msra.mxu0 0.0
    %150 = vmatprep.subr.mxu0 0.0
    %151 = vmatpush2.msra.mxu0 0.0
    %152 = vmatprep.subr.mxu0 0.0
    %153 = vmatpush2.msra.mxu0 0.0
    %154 = vmatprep.subr.mxu0 0.0
    %155 = vmatpush2.msra.mxu0 0.0
    %156 = vmatprep.subr.mxu0 0.0
    %157 = vmatpush2.msra.mxu0 0.0
    %158 = vmatprep.subr.mxu0 0.0
    %159 = vmatpush2.msra.mxu0 0.0
    %160 = vmatprep.subr.mxu0 0.0
    %161 = vmatpush2.msra.mxu0 0.0
    %162 = vmatprep.subr.mxu0 0.0
    %163 = vmatpush2.msra.mxu0 0.0
    %164 = vmatprep.subr.mxu0 0.0
    %165 = vmatpush2.msra.mxu0 0.0
    %166 = vmatprep.subr.mxu0 0.0
    %167 = vmatpush2.msra.mxu0 0.0
    %168 = vmatprep.subr.mxu0 0.0
    %169 = vmatpush2.msra.mxu0 0.0
    %170 = vmatprep.mubr.f32.mxu0 0.0
    %171 = vmatmul.mubr.f32.gmra.mxu0 %v104
    %v172 = vpop.f32.mrf.mxu0
    %v173 = vadd.f32 %v101, %v172
    %v174 = vpop.f32.mrf.mxu0
    %175 = vdwg.mxu0
    %v176 = vmax.f32 %v173, 0.0
    %v177 = vld [vmem:[#allocation6] sm:$0xff]
    %v178 = vld [vmem:[#allocation6 + $0x8] sm:$0xff]
    %v179 = vld [vmem:[#allocation6 + $0x10] sm:$0xff]
    %v180 = vld [vmem:[#allocation6 + $0x18] sm:$0xff]
    %v181 = vld [vmem:[%s6 + $0x1] sm:$0x1]
    %v182 = vlaneseq
    %v183 = vshrl.u32 %v182, 7
    %v184 = vsub.s32 0, %v183
    %v185 = vrot.slane %v181, %v184
    %v187 = vsel %vm102, %v176, 0
    %189 = vmatprep.subr.mxu0 0.0
    %190 = vmatpush1.msra.mxu0 0.0
    %191 = vmatprep.subr.mxu0 0.0
    %192 = vmatpush1.msra.mxu0 0.0
    %193 = vmatprep.subr.mxu0 0.0
    %194 = vmatpush1.msra.mxu0 0.0
    %195 = vmatprep.subr.mxu0 0.0
    %196 = vmatpush1.msra.mxu0 0.0
    %197 = vmatprep.subr.mxu0 0.0
    %198 = vmatpush1.msra.mxu0 0.0
    %199 = vmatprep.subr.mxu0 0.0
    %200 = vmatpush1.msra.mxu0 0.0
    %201 = vmatprep.subr.mxu0 0.0
    %202 = vmatpush1.msra.mxu0 0.0
    %203 = vmatprep.subr.mxu0 0.0
    %204 = vmatpush1.msra.mxu0 0.0
    %205 = vmatprep.subr.mxu0 0.0
    %206 = vmatpush1.msra.mxu0 0.0
    %207 = vmatprep.subr.mxu0 0.0
    %208 = vmatpush1.msra.mxu0 0.0
    %209 = vmatprep.subr.mxu0 0.0
    %210 = vmatpush1.msra.mxu0 0.0
    %211 = vmatprep.subr.mxu0 0.0
    %212 = vmatpush1.msra.mxu0 0.0
    %213 = vmatprep.subr.mxu0 0.0
    %214 = vmatpush1.msra.mxu0 %v180
    %215 = vmatprep.subr.mxu0 0.0
    %216 = vmatpush1.msra.mxu0 %v179
    %217 = vmatprep.subr.mxu0 0.0
    %218 = vmatpush1.msra.mxu0 %v178
    %219 = vmatprep.subr.mxu0 0.0
    %220 = vmatpush1.msra.mxu0 %v177
    %221 = vmatprep.subr.mxu0 0.0
    %222 = vmatpush2.msra.mxu0 0.0
    %223 = vmatprep.subr.mxu0 0.0
    %224 = vmatpush2.msra.mxu0 0.0
    %225 = vmatprep.subr.mxu0 0.0
    %226 = vmatpush2.msra.mxu0 0.0
    %227 = vmatprep.subr.mxu0 0.0
    %228 = vmatpush2.msra.mxu0 0.0
    %229 = vmatprep.subr.mxu0 0.0
    %230 = vmatpush2.msra.mxu0 0.0
    %231 = vmatprep.subr.mxu0 0.0
    %232 = vmatpush2.msra.mxu0 0.0
    %233 = vmatprep.subr.mxu0 0.0
    %234 = vmatpush2.msra.mxu0 0.0
    %235 = vmatprep.subr.mxu0 0.0
    %236 = vmatpush2.msra.mxu0 0.0
    %237 = vmatprep.subr.mxu0 0.0
    %238 = vmatpush2.msra.mxu0 0.0
    %239 = vmatprep.subr.mxu0 0.0
    %240 = vmatpush2.msra.mxu0 0.0
    %241 = vmatprep.subr.mxu0 0.0
    %242 = vmatpush2.msra.mxu0 0.0
    %243 = vmatprep.subr.mxu0 0.0
    %244 = vmatpush2.msra.mxu0 0.0
    %245 = vmatprep.subr.mxu0 0.0
    %246 = vmatpush2.msra.mxu0 0.0
    %247 = vmatprep.subr.mxu0 0.0
    %248 = vmatpush2.msra.mxu0 0.0
    %249 = vmatprep.subr.mxu0 0.0
    %250 = vmatpush2.msra.mxu0 0.0
    %251 = vmatprep.subr.mxu0 0.0
    %252 = vmatpush2.msra.mxu0 0.0
    %253 = vmatprep.mubr.f32.mxu0 0.0
    %254 = vmatmul.mubr.f32.gmra.mxu0 %v187
    %v255 = vpop.f32.mrf.mxu0
    %v256 = vadd.f32 %v185, %v255
    %v257 = vpop.f32.mrf.mxu0
    %258 = vdwg.mxu0
    %v259 = vand.u32 2147483647, %v256
    %v260 = vsub.f32 0.0, %v259
    %v261 = vmul.f32 %v260, 1.442695
    %v262 = vpow.pop %v261
    %v263 = vadd.f32 %v262, 1.0
    %v264 = vrcp.pop %v263
    %v265 = vmul.f32 1.0, %v264
    %vm266 = vcmp.ge.f32.partialorder %v256, 0.0
    %v267 = vmul.f32 %v262, %v265
    %v268 = vsel %vm266, %v265, %v267
    %v269 = vld [vmem:[#allocation7] sm:$0xff]
    %v270 = vld [vmem:[#allocation7 + $0x8] sm:$0xff]
    %v271 = vld [vmem:[#allocation7 + $0x10] sm:$0xff]
    %v272 = vld [vmem:[#allocation7 + $0x18] sm:$0xff]
    %v273 = vld [vmem:[%s6 + $0x2] sm:$0x1]
    %v274 = vlaneseq
    %v275 = vshrl.u32 %v274, 7
    %v276 = vsub.s32 0, %v275
    %v277 = vrot.slane %v273, %v276
    %v279 = vsel %vm102, %v268, 0
    %281 = vmatprep.subr.mxu0 0.0
    %282 = vmatpush1.msra.mxu0 0.0
    %283 = vmatprep.subr.mxu0 0.0
    %284 = vmatpush1.msra.mxu0 0.0
    %285 = vmatprep.subr.mxu0 0.0
    %286 = vmatpush1.msra.mxu0 0.0
    %287 = vmatprep.subr.mxu0 0.0
    %288 = vmatpush1.msra.mxu0 0.0
    %289 = vmatprep.subr.mxu0 0.0
    %290 = vmatpush1.msra.mxu0 0.0
    %291 = vmatprep.subr.mxu0 0.0
    %292 = vmatpush1.msra.mxu0 0.0
    %293 = vmatprep.subr.mxu0 0.0
    %294 = vmatpush1.msra.mxu0 0.0
    %295 = vmatprep.subr.mxu0 0.0
    %296 = vmatpush1.msra.mxu0 0.0
    %297 = vmatprep.subr.mxu0 0.0
    %298 = vmatpush1.msra.mxu0 0.0
    %299 = vmatprep.subr.mxu0 0.0
    %300 = vmatpush1.msra.mxu0 0.0
    %301 = vmatprep.subr.mxu0 0.0
    %302 = vmatpush1.msra.mxu0 0.0
    %303 = vmatprep.subr.mxu0 0.0
    %304 = vmatpush1.msra.mxu0 0.0
    %305 = vmatprep.subr.mxu0 0.0
    %306 = vmatpush1.msra.mxu0 %v272
    %307 = vmatprep.subr.mxu0 0.0
    %308 = vmatpush1.msra.mxu0 %v271
    %309 = vmatprep.subr.mxu0 0.0
    %310 = vmatpush1.msra.mxu0 %v270
    %311 = vmatprep.subr.mxu0 0.0
    %312 = vmatpush1.msra.mxu0 %v269
    %313 = vmatprep.subr.mxu0 0.0
    %314 = vmatpush2.msra.mxu0 0.0
    %315 = vmatprep.subr.mxu0 0.0
    %316 = vmatpush2.msra.mxu0 0.0
    %317 = vmatprep.subr.mxu0 0.0
    %318 = vmatpush2.msra.mxu0 0.0
    %319 = vmatprep.subr.mxu0 0.0
    %320 = vmatpush2.msra.mxu0 0.0
    %321 = vmatprep.subr.mxu0 0.0
    %322 = vmatpush2.msra.mxu0 0.0
    %323 = vmatprep.subr.mxu0 0.0
    %324 = vmatpush2.msra.mxu0 0.0
    %325 = vmatprep.subr.mxu0 0.0
    %326 = vmatpush2.msra.mxu0 0.0
    %327 = vmatprep.subr.mxu0 0.0
    %328 = vmatpush2.msra.mxu0 0.0
    %329 = vmatprep.subr.mxu0 0.0
    %330 = vmatpush2.msra.mxu0 0.0
    %331 = vmatprep.subr.mxu0 0.0
    %332 = vmatpush2.msra.mxu0 0.0
    %333 = vmatprep.subr.mxu0 0.0
    %334 = vmatpush2.msra.mxu0 0.0
    %335 = vmatprep.subr.mxu0 0.0
    %336 = vmatpush2.msra.mxu0 0.0
    %337 = vmatprep.subr.mxu0 0.0
    %338 = vmatpush2.msra.mxu0 0.0
    %339 = vmatprep.subr.mxu0 0.0
    %340 = vmatpush2.msra.mxu0 0.0
    %341 = vmatprep.subr.mxu0 0.0
    %342 = vmatpush2.msra.mxu0 0.0
    %343 = vmatprep.subr.mxu0 0.0
    %344 = vmatpush2.msra.mxu0 0.0
    %345 = vmatprep.mubr.f32.mxu0 0.0
    %346 = vmatmul.mubr.f32.gmra.mxu0 %v279
    %v347 = vpop.f32.mrf.mxu0
    %v348 = vadd.f32 %v277, %v347
    %v349 = vpop.f32.mrf.mxu0
    %350 = vdwg.mxu0
    %v351 = vand.u32 2147483647, %v348
    %v352 = vsub.f32 0.0, %v351
    %v353 = vmul.f32 %v352, 1.442695
    %v354 = vpow.pop %v353
    %v355 = vadd.f32 %v354, 1.0
    %v356 = vrcp.pop %v355
    %v357 = vmul.f32 1.0, %v356
    %vm358 = vcmp.ge.f32.partialorder %v348, 0.0
    %v359 = vmul.f32 %v354, %v357
    %v360 = vsel %vm358, %v357, %v359
    %v361 = vld [vmem:[#allocation9] sm:$0xff]
    %v362 = vld [vmem:[#allocation9 + $0x8] sm:$0xff]
    %v363 = vld [vmem:[#allocation9 + $0x10] sm:$0xff]
    %v364 = vld [vmem:[#allocation9 + $0x18] sm:$0xff]
    %v365 = vld [vmem:[#allocation9 + $0x20] sm:$0xff]
    %v366 = vld [vmem:[#allocation9 + $0x28] sm:$0xff]
    %v367 = vld [vmem:[#allocation9 + $0x30] sm:$0xff]
    %v368 = vld [vmem:[#allocation9 + $0x38] sm:$0xff]
    %v369 = vld [vmem:[#allocation9 + $0x40] sm:$0xff]
    %v370 = vld [vmem:[#allocation9 + $0x48] sm:$0xff]
    %v371 = vld [vmem:[#allocation9 + $0x50] sm:$0xff]
    %v372 = vld [vmem:[#allocation9 + $0x58] sm:$0xff]
    %v373 = vld [vmem:[#allocation9 + $0x60] sm:$0xff]
    %v374 = vld [vmem:[#allocation9 + $0x68] sm:$0xff]
    %v375 = vld [vmem:[#allocation9 + $0x70] sm:$0xff]
    %v376 = vld [vmem:[#allocation9 + $0x78] sm:$0xff]
    %v377 = vld [vmem:[%s6 + $0x3] sm:$0x1]
    %v378 = vlaneseq
    %v379 = vshrl.u32 %v378, 7
    %v380 = vsub.s32 0, %v379
    %v381 = vrot.slane %v377, %v380
    %382 = vmatprep.subr.mxu0 0.0
    %383 = vmatpush1.msra.mxu0 %v376
    %384 = vmatprep.subr.mxu0 0.0
    %385 = vmatpush1.msra.mxu0 %v375
    %386 = vmatprep.subr.mxu0 0.0
    %387 = vmatpush1.msra.mxu0 %v374
    %388 = vmatprep.subr.mxu0 0.0
    %389 = vmatpush1.msra.mxu0 %v373
    %390 = vmatprep.subr.mxu0 0.0
    %391 = vmatpush1.msra.mxu0 %v372
    %392 = vmatprep.subr.mxu0 0.0
    %393 = vmatpush1.msra.mxu0 %v371
    %394 = vmatprep.subr.mxu0 0.0
    %395 = vmatpush1.msra.mxu0 %v370
    %396 = vmatprep.subr.mxu0 0.0
    %397 = vmatpush1.msra.mxu0 %v369
    %398 = vmatprep.subr.mxu0 0.0
    %399 = vmatpush1.msra.mxu0 %v368
    %400 = vmatprep.subr.mxu0 0.0
    %401 = vmatpush1.msra.mxu0 %v367
    %402 = vmatprep.subr.mxu0 0.0
    %403 = vmatpush1.msra.mxu0 %v366
    %404 = vmatprep.subr.mxu0 0.0
    %405 = vmatpush1.msra.mxu0 %v365
    %406 = vmatprep.subr.mxu0 0.0
    %407 = vmatpush1.msra.mxu0 %v364
    %408 = vmatprep.subr.mxu0 0.0
    %409 = vmatpush1.msra.mxu0 %v363
    %410 = vmatprep.subr.mxu0 0.0
    %411 = vmatpush1.msra.mxu0 %v362
    %412 = vmatprep.subr.mxu0 0.0
    %413 = vmatpush1.msra.mxu0 %v361
    %414 = vmatprep.subr.mxu0 0.0
    %415 = vmatpush2.msra.mxu0 0.0
    %416 = vmatprep.subr.mxu0 0.0
    %417 = vmatpush2.msra.mxu0 0.0
    %418 = vmatprep.subr.mxu0 0.0
    %419 = vmatpush2.msra.mxu0 0.0
    %420 = vmatprep.subr.mxu0 0.0
    %421 = vmatpush2.msra.mxu0 0.0
    %422 = vmatprep.subr.mxu0 0.0
    %423 = vmatpush2.msra.mxu0 0.0
    %424 = vmatprep.subr.mxu0 0.0
    %425 = vmatpush2.msra.mxu0 0.0
    %426 = vmatprep.subr.mxu0 0.0
    %427 = vmatpush2.msra.mxu0 0.0
    %428 = vmatprep.subr.mxu0 0.0
    %429 = vmatpush2.msra.mxu0 0.0
    %430 = vmatprep.subr.mxu0 0.0
    %431 = vmatpush2.msra.mxu0 0.0
    %432 = vmatprep.subr.mxu0 0.0
    %433 = vmatpush2.msra.mxu0 0.0
    %434 = vmatprep.subr.mxu0 0.0
    %435 = vmatpush2.msra.mxu0 0.0
    %436 = vmatprep.subr.mxu0 0.0
    %437 = vmatpush2.msra.mxu0 0.0
    %438 = vmatprep.subr.mxu0 0.0
    %439 = vmatpush2.msra.mxu0 0.0
    %440 = vmatprep.subr.mxu0 0.0
    %441 = vmatpush2.msra.mxu0 0.0
    %442 = vmatprep.subr.mxu0 0.0
    %443 = vmatpush2.msra.mxu0 0.0
    %444 = vmatprep.subr.mxu0 0.0
    %445 = vmatpush2.msra.mxu0 0.0
    %446 = vmatprep.mubr.f32.mxu0 0.0
    %447 = vmatmul.mubr.f32.gmra.mxu0 %v360
    %v448 = vpop.f32.mrf.mxu0
    %v449 = vadd.f32 %v381, %v448
    %v450 = vpop.f32.mrf.mxu0
    %451 = vdwg.mxu0
    %v452 = vmax.f32 %v449, 0.0
    %v453 = vld [vmem:[%s5] sm:$0x1]
    %v455 = vlaneseq
    %v456 = vshrl.u32 %v455, 7
    %v457 = vsub.s32 0, %v456
    %v458 = vrot.slane %v453, %v457
    %v460 = vmul.f32 %v452, %v458
    %461 = vadd.xlane.f32.xlu0 %v460
    %v462 = vpop.xlane.xlu0 %461
    %v463 = vld [vmem:[%s6 + $0x4] sm:$0x1]
    %v464 = vlaneseq
    %v465 = vshrl.u32 %v464, 7
    %v466 = vsub.s32 0, %v465
    %v467 = vrot.slane %v463, %v466
    %v468 = vadd.f32 %v462, %v467
    %v469 = vand.u32 2147483647, %v468
    %v470 = vsub.f32 0.0, %v469
    %v471 = vmul.f32 %v470, 1.442695
    %v472 = vpow.pop %v471
    %v473 = vadd.f32 %v472, 1.0
    %v474 = vrcp.pop %v473
    %v475 = vmul.f32 1.0, %v474
    %vm476 = vcmp.ge.f32.partialorder %v468, 0.0
    %v477 = vmul.f32 %v472, %v475
    %v478 = vsel %vm476, %v475, %v477
    %vm479 = vcmask 7168
    %480 = vst.msk [vmem:[%s7] sm:$0xff] %vm479, %v478
    // Predicated region
    $region50: #{tpu_custom_call.1} parent=1 // pred_check
      _
    $region51: #{tpu_custom_call.1} parent=1 // pred_check_branch
      %482 = sbr.rel (0) target = $region53
    $region52: #{tpu_custom_call.1} parent=1 // pred_region
      _
    $region53: #{tpu_custom_call.1} parent=1 // pred_fallthru
      _
    // Predicated region
    $region54: #{tpu_custom_call.1} parent=1 // pred_check
      _
    $region55: #{tpu_custom_call.1} parent=1 // pred_check_branch
      %484 = sbr.rel (0) target = $region57
    $region56: #{tpu_custom_call.1} parent=1 // pred_region
      _
    $region57: #{tpu_custom_call.1} parent=1 // pred_fallthru
      _
    %485 = vsyncpa [#allocation3], 1
    %486 = vsyncpa [#allocation5], 1
    %487 = vsyncpa [#allocation8], 1

</llo_original>
